<compile_context>
chip_gen: v7x
topology: tpu7x:2x2x1
jax: 0.10.0
libtpu: 0.0.40
codegen_flags: <defaults>
</compile_context>

<pallas_src>
import math

import jax
import jax.numpy as jnp
from jax.experimental import pallas as pl
from jax.experimental.pallas import tpu as pltpu


def _round_up(x, m):
    return (x + m - 1) // m * m


# ---------------------------------------------------------------------------
# Kernel: one fused MXU matmul + bias add for this batch tile.
# ---------------------------------------------------------------------------
def _packed_linear_kernel(h_ref, w_ref, b_ref, o_ref):
    acc = jnp.dot(h_ref[...], w_ref[...], preferred_element_type=jnp.float32)
    o_ref[...] = (acc + b_ref[...]).astype(o_ref.dtype)   # (TB,dout)+(1,dout)


# ---------------------------------------------------------------------------
# One-time parameter packing (hoisted out of the per-call path).
# ---------------------------------------------------------------------------
def pack_reconstructor_params(weight, cat_weights, cat_biases, d_token):
    """Pack all per-token linear maps into one block-structured matrix.

    weight       : (d_numerical, d_token)
    cat_weights  : list of (categories[i], d_token)   (nn.Linear weight layout)
    cat_biases   : list of (categories[i],)

    Returns (W_big, b_big, meta) with
      W_big : (n_tokens*d_token, d_out_pad) f32
      b_big : (1, d_out_pad) f32
      meta  : (d_numerical, d_sizes, d_out, d_out_pad)
    Call ONCE at parameter-creation time; it is pure overhead per forward.
    """
    d_numerical, dt = weight.shape
    assert dt == d_token
    d_sizes = tuple(int(w.shape[0]) for w in cat_weights)
    n_cat = len(d_sizes)
    n_tokens = d_numerical + n_cat
    d_out = d_numerical + sum(d_sizes)
    # Lane-dense output: pad columns to a 128 multiple (zero columns, sliced
    # off in the wrapper) so the epilogue stores are unmasked.
    d_out_pad = _round_up(d_out, 128)

    W = jnp.zeros((n_tokens, d_token, d_out_pad), jnp.float32)
    # Numerical tokens: output column j (< d_numerical) only sees token j.
    num_block = (weight.astype(jnp.float32)[:, :, None]
                 * jnp.eye(d_numerical, dtype=jnp.float32)[:, None, :])
    W = W.at[:d_numerical, :, :d_numerical].set(num_block)
    # Categorical tokens: output block i only sees token d_numerical + i.
    off = d_numerical
    for i, wi in enumerate(cat_weights):
        di = d_sizes[i]
        W = W.at[d_numerical + i, :, off:off + di].set(wi.T.astype(jnp.float32))
        off += di
    W_big = W.reshape(n_tokens * d_token, d_out_pad)

    b = jnp.zeros((d_out_pad,), jnp.float32)
    off = d_numerical
    for bi, di in zip(cat_biases, d_sizes):
        b = b.at[off:off + di].set(bi.astype(jnp.float32))
        off += di
    b_big = b.reshape(1, d_out_pad)

    meta = (d_numerical, d_sizes, d_out, d_out_pad)
    return W_big, b_big, meta


def _choose_batch_tile(B, K, itemsize, d_out_pad):
    """Batch tile sized by bytes (~4 MiB of h), >=2 grid steps when possible,
    and bounded by a conservative VMEM budget (v7x: 64 MiB phys)."""
    tb = max(8, min(2048, (4 << 20) // max(1, K * itemsize)))
    if B >= 16:
        # keep at least 2 grid steps so v7x's two TensorCores both get work
        tb = min(tb, _round_up(pl.cdiv(B, 2), 8))
    tb = max(8, _round_up(min(tb, _round_up(B, 8)), 8))

    def vmem_bytes(t):
        # 2x buffered h tile + 2x buffered out tile + 1x resident weights/bias
        return (2 * t * K * itemsize + 2 * t * d_out_pad * 4
                + K * d_out_pad * 4 + d_out_pad * 4)

    while tb > 8 and vmem_bytes(tb) > (40 << 20):
        tb = max(8, _round_up(tb // 2, 8))
    return tb, vmem_bytes(tb)


def _resident_spec(block_shape):
    # Constant index_map -> single-buffer the resident block (frees VMEM,
    # matters on v7x's 64 MiB). Fall back cleanly if pipeline_mode is absent.
    try:
        return pl.BlockSpec(block_shape, lambda i: (0, 0),
                            pipeline_mode=pl.Buffered(1))
    except TypeError:
        return pl.BlockSpec(block_shape, lambda i: (0, 0))


# ---------------------------------------------------------------------------
# Forward (per-call path: one pallas_call + cheap wrapper slices).
# ---------------------------------------------------------------------------
def reconstructor_forward_packed(h, W_big, b_big, meta):
    d_numerical, d_sizes, d_out, d_out_pad = meta
    B, n_tokens, d_token = h.shape
    K = n_tokens * d_token
    assert W_big.shape == (K, d_out_pad)

    # Free contiguous reshape — no extra HBM copy, no dtype conversion.
    h_flat = h.reshape(B, K)
    itemsize = jnp.dtype(h_flat.dtype).itemsize

    TB, vmem_needed = _choose_batch_tile(B, K, itemsize, d_out_pad)
    grid = (pl.cdiv(B, TB),)   # ragged last block handled by Pallas masking

    cost = pl.CostEstimate(
        flops=int(2 * B * K * d_out_pad),
        transcendentals=0,
        bytes_accessed=int(itemsize * B * K
                           + 4 * (K * d_out_pad + d_out_pad + B * d_out_pad)),
    )

    out_flat = pl.pallas_call(
        _packed_linear_kernel,
        out_shape=jax.ShapeDtypeStruct((B, d_out_pad), jnp.float32),
        grid_spec=pl.GridSpec(
            grid=grid,
            in_specs=[
                pl.BlockSpec((TB, K), lambda i: (i, 0)),   # streamed h tile
                _resident_spec((K, d_out_pad)),            # resident weights
                _resident_spec((1, d_out_pad)),            # resident bias
            ],
            out_specs=pl.BlockSpec((TB, d_out_pad), lambda i: (i, 0)),
        ),
        compiler_params=pltpu.CompilerParams(
            dimension_semantics=("parallel",),              # megacore on v7x
            vmem_limit_bytes=int(min(48 << 20,
                                     max(vmem_needed + (4 << 20), 16 << 20)))),
        cost_estimate=cost,
    )(h_flat, W_big, b_big)

    # Recover PyTorch's (tensor, list-of-tensors) output structure.
    recon_x_num = out_flat[:, :d_numerical]
    recon_x_cat = []
    off = d_numerical
    for di in d_sizes:
        recon_x_cat.append(out_flat[:, off:off + di])
        off += di
    return recon_x_num, recon_x_cat


def reconstructor_forward(h, weight, cat_weights, cat_biases):
    """Convenience wrapper: packs params (one-time cost) then runs forward."""
    W_big, b_big, meta = pack_reconstructor_params(
        weight, cat_weights, cat_biases, weight.shape[1])
    return reconstructor_forward_packed(h, W_big, b_big, meta)


def reference_forward(h, weight, cat_weights, cat_biases):
    """Pure-JAX reference mirroring the PyTorch forward (for verification)."""
    d_numerical = weight.shape[0]
    h_num = h[:, :d_numerical]
    h_cat = h[:, d_numerical:]
    recon_x_num = jnp.sum(h_num * weight[None], axis=-1)
    recon_x_cat = [h_cat[:, i] @ cat_weights[i].T + cat_biases[i]
                   for i in range(len(cat_weights))]
    return recon_x_num, recon_x_cat


def xavier_uniform(key, shape, gain):
    # PyTorch xavier_uniform_ on a 2-D tensor: fan_out = shape[0], fan_in = shape[1]
    fan_out, fan_in = shape
    bound = gain * math.sqrt(6.0 / (fan_in + fan_out))
    return jax.random.uniform(key, shape, jnp.float32, -bound, bound)


if __name__ == "__main__":
    # Small shapes consistent with the module.
    B = 8
    d_numerical = 6
    categories = [3, 5, 7]
    d_token = 32
    n_cat = len(categories)
    n_tokens = d_numerical + n_cat

    key = jax.random.PRNGKey(0)
    k_h, k_w, *k_cat = jax.random.split(key, 2 + 2 * n_cat)

    # Parameters (shapes / init style from Reconstructor.__init__).
    gain = 1.0 / math.sqrt(2.0)
    weight = xavier_uniform(k_w, (d_numerical, d_token), gain)
    cat_weights = [xavier_uniform(k_cat[2 * i], (categories[i], d_token), gain)
                   for i in range(n_cat)]
    cat_biases = [jax.random.uniform(k_cat[2 * i + 1], (categories[i],),
                                     jnp.float32,
                                     -1.0 / math.sqrt(d_token),
                                     1.0 / math.sqrt(d_token))
                  for i in range(n_cat)]

    # Input latent h.
    h = jax.random.normal(k_h, (B, n_tokens, d_token), jnp.float32)

    # Pack parameters ONCE (hoisted out of the per-call path).
    W_big, b_big, meta = pack_reconstructor_params(
        weight, cat_weights, cat_biases, d_token)
    W_big = jax.block_until_ready(W_big)

    out_num, out_cat = reconstructor_forward_packed(h, W_big, b_big, meta)
    out_num = jax.block_until_ready(out_num)
    out_cat = [jax.block_until_ready(o) for o in out_cat]

    ref_num, ref_cat = reference_forward(h, weight, cat_weights, cat_biases)

    assert out_num.shape == (B, d_numerical), out_num.shape
    max_err = float(jnp.max(jnp.abs(out_num - ref_num)))
    for o, r, d in zip(out_cat, ref_cat, categories):
        assert o.shape == (B, d), o.shape
        max_err = max(max_err, float(jnp.max(jnp.abs(o - r))))
    assert max_err < 1e-3, max_err

    print("KERNEL_OK")
</pallas_src>

<mosaic_0001>
module attributes {stable_mosaic.version = 11 : i64} {
  func.func @_packed_linear_kernel(%arg0: i32, %arg1: memref<8x288xf32, #tpu.memory_space<vmem>>, %arg2: memref<288x128xf32, #tpu.memory_space<vmem>>, %arg3: memref<1x128xf32, #tpu.memory_space<vmem>>, %arg4: memref<8x128xf32, #tpu.memory_space<vmem>>) attributes {dimension_semantics = [#tpu.dimension_semantics<parallel>], iteration_bounds = array<i64: 1>, scalar_prefetch = 0 : i64, scratch_operands = 0 : i64, tpu.core_type = #tpu.core_type<tc>, window_params = [{transform_indices = @transform_0, window_bounds = array<i64: 8, 288>}, {pipeline_mode = #tpu.pipeline_mode<synchronous>, transform_indices = @transform_1, window_bounds = array<i64: 288, 128>}, {pipeline_mode = #tpu.pipeline_mode<synchronous>, transform_indices = @transform_2, window_bounds = array<i64: 1, 128>}, {transform_indices = @transform_3, window_bounds = array<i64: 8, 128>}]} {
    %c0 = arith.constant 0 : index
    %c0_0 = arith.constant 0 : index
    %0 = vector.load %arg1[%c0, %c0_0] : memref<8x288xf32, #tpu.memory_space<vmem>>, vector<8x288xf32>
    %c0_1 = arith.constant 0 : index
    %c0_2 = arith.constant 0 : index
    %1 = vector.load %arg2[%c0_1, %c0_2] : memref<288x128xf32, #tpu.memory_space<vmem>>, vector<288x128xf32>
    %cst = arith.constant dense<0.000000e+00> : vector<8x128xf32>
    %2 = tpu.matmul %0, %1, %cst {dimension_numbers = #tpu.dot_dimension_numbers<[1], [0], [0], [1], [0, 0, 1, 1], [], []>} : vector<8x288xf32>, vector<288x128xf32>, vector<8x128xf32> -> vector<8x128xf32>
    %c0_3 = arith.constant 0 : index
    %c0_4 = arith.constant 0 : index
    %3 = vector.load %arg3[%c0_3, %c0_4] : memref<1x128xf32, #tpu.memory_space<vmem>>, vector<1x128xf32>
    %4 = vector.broadcast %3 : vector<1x128xf32> to vector<8x128xf32>
    %5 = arith.addf %2, %4 : vector<8x128xf32>
    %c0_5 = arith.constant 0 : index
    %c0_6 = arith.constant 0 : index
    %6 = vector.load %arg4[%c0_5, %c0_6] : memref<8x128xf32, #tpu.memory_space<vmem>>, vector<8x128xf32>
    tpu.vector_store %arg4[%c0_5, %c0_6], %5 {strides = array<i32>} : memref<8x128xf32, #tpu.memory_space<vmem>>, vector<8x128xf32>,
    return
  }
  func.func @transform_0(%arg0: i32) -> (i32, i32) {
    %c0_i32 = arith.constant 0 : i32
    %c0_i32_0 = arith.constant 0 : i32
    return %arg0, %c0_i32 : i32, i32
  }
  func.func @transform_1(%arg0: i32) -> (i32, i32) {
    %c0_i32 = arith.constant 0 : i32
    %c0_i32_0 = arith.constant 0 : i32
    %c0_i32_1 = arith.constant 0 : i32
    return %c0_i32, %c0_i32_0 : i32, i32
  }
  func.func @transform_2(%arg0: i32) -> (i32, i32) {
    %c0_i32 = arith.constant 0 : i32
    %c0_i32_0 = arith.constant 0 : i32
    %c0_i32_1 = arith.constant 0 : i32
    return %c0_i32, %c0_i32_0 : i32, i32
  }
  func.func @transform_3(%arg0: i32) -> (i32, i32) {
    %c0_i32 = arith.constant 0 : i32
    %c0_i32_0 = arith.constant 0 : i32
    return %arg0, %c0_i32 : i32, i32
  }
}

</mosaic_0001>

<llo_original>
// kernel: tpu_custom_call.1
$region0: #{tpu_custom_call.1}
  #allocation0 [shape = 'u32[]', space=smem, size = 0x4, offset = 0x4, fixed_abs, tag = 'smem constant byte address 0x4 - core index']
  #allocation1 [shape = 'u32[144,128]{1,0:T(1,128)}', space=vmem, size = 0x12000, scoped, tag = 'internal scratch']
  %s0 = inlined_call_operand.hbm [shape: f32[8,288], index: 0, kind: input, shape index: {}]
  %s1 = inlined_call_operand.hbm [shape: f32[288,128], index: 1, kind: input, shape index: {}]
  %s2 = inlined_call_operand.vmem [shape: f32[1,128], index: 2, kind: input, shape index: {}]
  %s3 = inlined_call_operand.hbm [shape: f32[8,128], index: 3, kind: output, shape index: {}]
  %s4 = sld [smem:[#allocation0]]
  $region30: #{tpu_custom_call.1} parent=0
    _
  %s6 = ssub.s32 1, %s4
  %s7 = scalar_select 0, %s6, %s4
  $region1: #{tpu_custom_call.1} parent=0
    #allocation2 [shape = 'u8[12288]{0}', space=vmem, size = 0x3000, scoped, tag = 'input window, operand 0, single buffered']
    #allocation3 [shape = 's32[1]{0}', space=sflag, size = 0x4, scoped, tag = 'scoped memory for tpu_custom_call.1']
    #allocation4 [shape = 's32[1]{0}', space=sflag, size = 0x4, scoped, tag = 'scoped memory for tpu_custom_call.1']
    #allocation5 [shape = 'u8[147456]{0}', space=vmem, size = 0x24000, scoped, tag = 'input window, operand 1, single buffered']
    #allocation6 [shape = 's32[1]{0}', space=sflag, size = 0x4, scoped, tag = 'scoped memory for tpu_custom_call.1']
    #allocation7 [shape = 'u8[4096]{0}', space=vmem, size = 0x1000, scoped, tag = 'output window, operand 0, single buffered']
    %8 = vsyncpa [#allocation3], 0
    %9 = vsyncpa [#allocation6], 0
    %10 = vsyncpa [#allocation4], 0
    // Predicated region
    $region2: #{tpu_custom_call.1} parent=1 // pred_check
      _
    $region3: #{tpu_custom_call.1} parent=1 // pred_check_branch
      %12 = sbr.rel (0) target = $region5
    $region4: #{tpu_custom_call.1} parent=1 // pred_region
      %s14 = ssub.s32 384, 384
      %15 = vsyncadd [#allocation3], %s14
      %s17 = sshll.u32 [#allocation2], 4
      %s18 = int_to_ptr.vmem [resolvable:$true] %s17
      %20 = dma.hbm_to_vmem [thread:$0]  %s0, 384, %s18, [#allocation3]
    $region5: #{tpu_custom_call.1} parent=1 // pred_fallthru
      _
    // Predicated region
    $region6: #{tpu_custom_call.1} parent=1 // pred_check
      _
    $region7: #{tpu_custom_call.1} parent=1 // pred_check_branch
      %22 = sbr.rel (0) target = $region9
    $region8: #{tpu_custom_call.1} parent=1 // pred_region
      %s24 = ssub.s32 4608, 4608
      %25 = vsyncadd [#allocation6], %s24
      %s26 = sshll.u32 [#allocation5], 4
      %s27 = int_to_ptr.vmem [resolvable:$true] %s26
      %32 = dma.hbm_to_vmem [thread:$0]  %s1, 4608, %s27, [#allocation6], 128, 128, 8
    $region9: #{tpu_custom_call.1} parent=1 // pred_fallthru
      _
    // Predicated region
    $region10: #{tpu_custom_call.1} parent=1 // pred_check
      _
    $region11: #{tpu_custom_call.1} parent=1 // pred_check_branch
      %34 = sbr.rel (0) target = $region13
    $region12: #{tpu_custom_call.1} parent=1 // pred_region
      _
    $region13: #{tpu_custom_call.1} parent=1 // pred_fallthru
      _
    // Predicated region
    $region14: #{tpu_custom_call.1} parent=1 // pred_check
      _
    $region15: #{tpu_custom_call.1} parent=1 // pred_check_branch
      %36 = sbr.rel (0) target = $region17
    $region16: #{tpu_custom_call.1} parent=1 // pred_region
      %37 = dma.done [#allocation3], 384
    $region17: #{tpu_custom_call.1} parent=1 // pred_fallthru
      _
    // Predicated region
    $region18: #{tpu_custom_call.1} parent=1 // pred_check
      _
    $region19: #{tpu_custom_call.1} parent=1 // pred_check_branch
      %39 = sbr.rel (0) target = $region21
    $region20: #{tpu_custom_call.1} parent=1 // pred_region
      %40 = dma.done [#allocation6], 4608
    $region21: #{tpu_custom_call.1} parent=1 // pred_fallthru
      _
    %v41 = vld [vmem:[#allocation2] sm:$0xff]
    %v42 = vld [vmem:[#allocation2 + $0x8] sm:$0xff]
    %v43 = vld [vmem:[#allocation2 + $0x10] sm:$0xff]
    %v44 = vld [vmem:[#allocation5] sm:$0xff]
    %v45 = vld [vmem:[#allocation5 + $0x8] sm:$0xff]
    %v46 = vld [vmem:[#allocation5 + $0x10] sm:$0xff]
    %v47 = vld [vmem:[#allocation5 + $0x18] sm:$0xff]
    %v48 = vld [vmem:[#allocation5 + $0x20] sm:$0xff]
    %v49 = vld [vmem:[#allocation5 + $0x28] sm:$0xff]
    %v50 = vld [vmem:[#allocation5 + $0x30] sm:$0xff]
    %v51 = vld [vmem:[#allocation5 + $0x38] sm:$0xff]
    %v52 = vld [vmem:[#allocation5 + $0x40] sm:$0xff]
    %v53 = vld [vmem:[#allocation5 + $0x48] sm:$0xff]
    %v54 = vld [vmem:[#allocation5 + $0x50] sm:$0xff]
    %v55 = vld [vmem:[#allocation5 + $0x58] sm:$0xff]
    %v56 = vld [vmem:[#allocation5 + $0x60] sm:$0xff]
    %v57 = vld [vmem:[#allocation5 + $0x68] sm:$0xff]
    %v58 = vld [vmem:[#allocation5 + $0x70] sm:$0xff]
    %v59 = vld [vmem:[#allocation5 + $0x78] sm:$0xff]
    %v60 = vld [vmem:[#allocation5 + $0x80] sm:$0xff]
    %v61 = vld [vmem:[#allocation5 + $0x88] sm:$0xff]
    %v62 = vld [vmem:[#allocation5 + $0x90] sm:$0xff]
    %v63 = vld [vmem:[#allocation5 + $0x98] sm:$0xff]
    %v64 = vld [vmem:[#allocation5 + $0xa0] sm:$0xff]
    %v65 = vld [vmem:[#allocation5 + $0xa8] sm:$0xff]
    %v66 = vld [vmem:[#allocation5 + $0xb0] sm:$0xff]
    %v67 = vld [vmem:[#allocation5 + $0xb8] sm:$0xff]
    %v68 = vld [vmem:[#allocation5 + $0xc0] sm:$0xff]
    %v69 = vld [vmem:[#allocation5 + $0xc8] sm:$0xff]
    %v70 = vld [vmem:[#allocation5 + $0xd0] sm:$0xff]
    %v71 = vld [vmem:[#allocation5 + $0xd8] sm:$0xff]
    %v72 = vld [vmem:[#allocation5 + $0xe0] sm:$0xff]
    %v73 = vld [vmem:[#allocation5 + $0xe8] sm:$0xff]
    %v74 = vld [vmem:[#allocation5 + $0xf0] sm:$0xff]
    %v75 = vld [vmem:[#allocation5 + $0xf8] sm:$0xff]
    %v76 = vld [vmem:[#allocation5 + $0x100] sm:$0xff]
    %v77 = vld [vmem:[#allocation5 + $0x108] sm:$0xff]
    %v78 = vld [vmem:[#allocation5 + $0x110] sm:$0xff]
    %v79 = vld [vmem:[#allocation5 + $0x118] sm:$0xff]
    %v80 = vld [vmem:[%s2] sm:$0x1]
    %v82 = vlaneseq
    %v83 = vshrl.u32 %v82, 7
    %v84 = vsub.s32 0, %v83
    %v85 = vrot.slane %v80, %v84
    %vm87 = vcmask 261120
    %v89 = vsel %vm87, %v43, 0
    %91 = vmatprep.subr.mxu0 0.0
    %92 = vmatpush1.msra.mxu0 %v44
    %93 = vmatprep.subr.mxu0 0.0
    %94 = vmatpush1.msra.mxu0 %v45
    %95 = vmatprep.subr.mxu0 0.0
    %96 = vmatpush1.msra.mxu0 %v46
    %97 = vmatprep.subr.mxu0 0.0
    %98 = vmatpush1.msra.mxu0 %v47
    %99 = vmatprep.subr.mxu0 0.0
    %100 = vmatpush1.msra.mxu0 %v48
    %101 = vmatprep.subr.mxu0 0.0
    %102 = vmatpush1.msra.mxu0 %v49
    %103 = vmatprep.subr.mxu0 0.0
    %104 = vmatpush1.msra.mxu0 %v50
    %105 = vmatprep.subr.mxu0 0.0
    %106 = vmatpush1.msra.mxu0 %v51
    %107 = vmatprep.subr.mxu0 0.0
    %108 = vmatpush1.msra.mxu0 %v52
    %109 = vmatprep.subr.mxu0 0.0
    %110 = vmatpush1.msra.mxu0 %v53
    %111 = vmatprep.subr.mxu0 0.0
    %112 = vmatpush1.msra.mxu0 %v54
    %113 = vmatprep.subr.mxu0 0.0
    %114 = vmatpush1.msra.mxu0 %v55
    %115 = vmatprep.subr.mxu0 0.0
    %116 = vmatpush1.msra.mxu0 %v56
    %117 = vmatprep.subr.mxu0 0.0
    %118 = vmatpush1.msra.mxu0 %v57
    %119 = vmatprep.subr.mxu0 0.0
    %120 = vmatpush1.msra.mxu0 %v58
    %121 = vmatprep.subr.mxu0 0.0
    %122 = vmatpush1.msra.mxu0 %v59
    %123 = vmatprep.subr.mxu0 0.0
    %124 = vmatpush1.msra.mxu0 %v60
    %125 = vmatprep.subr.mxu0 0.0
    %126 = vmatpush1.msra.mxu0 %v61
    %127 = vmatprep.subr.mxu0 0.0
    %128 = vmatpush1.msra.mxu0 %v62
    %129 = vmatprep.subr.mxu0 0.0
    %130 = vmatpush1.msra.mxu0 %v63
    %131 = vmatprep.subr.mxu0 0.0
    %132 = vmatpush1.msra.mxu0 %v64
    %133 = vmatprep.subr.mxu0 0.0
    %134 = vmatpush1.msra.mxu0 %v65
    %135 = vmatprep.subr.mxu0 0.0
    %136 = vmatpush1.msra.mxu0 %v66
    %137 = vmatprep.subr.mxu0 0.0
    %138 = vmatpush1.msra.mxu0 %v67
    %139 = vmatprep.subr.mxu0 0.0
    %140 = vmatpush1.msra.mxu0 %v68
    %141 = vmatprep.subr.mxu0 0.0
    %142 = vmatpush1.msra.mxu0 %v69
    %143 = vmatprep.subr.mxu0 0.0
    %144 = vmatpush1.msra.mxu0 %v70
    %145 = vmatprep.subr.mxu0 0.0
    %146 = vmatpush1.msra.mxu0 %v71
    %147 = vmatprep.subr.mxu0 0.0
    %148 = vmatpush1.msra.mxu0 %v72
    %149 = vmatprep.subr.mxu0 0.0
    %150 = vmatpush1.msra.mxu0 %v73
    %151 = vmatprep.subr.mxu0 0.0
    %152 = vmatpush1.msra.mxu0 %v74
    %153 = vmatprep.subr.mxu0 0.0
    %154 = vmatpush1.msra.mxu0 %v75
    %155 = vmatprep.mubr.f32.mxu0 %v42
    %156 = vmatmul.mubr.f32.gmra.mrb[0].mxu0 %v41
    %v157 = vpop.f32.mrb[0].mxu0
    %v158 = vadd.f32 %v85, %v157
    %v159 = vpop.f32.mrb[0].mxu0
    %160 = vdwg.mxu0
    %161 = vmatprep.subr.mxu0 0.0
    %162 = vmatpush1.msra.mxu0 %v76
    %163 = vmatprep.subr.mxu0 0.0
    %164 = vmatpush1.msra.mxu0 %v77
    %165 = vmatprep.subr.mxu0 0.0
    %166 = vmatpush1.msra.mxu0 %v78
    %167 = vmatprep.subr.mxu0 0.0
    %168 = vmatpush1.msra.mxu0 %v79
    %169 = vmatprep.subr.mxu0 0.0
    %170 = vmatpush1.msra.mxu0 0.0
    %171 = vmatprep.subr.mxu0 0.0
    %172 = vmatpush1.msra.mxu0 0.0
    %173 = vmatprep.subr.mxu0 0.0
    %174 = vmatpush1.msra.mxu0 0.0
    %175 = vmatprep.subr.mxu0 0.0
    %176 = vmatpush1.msra.mxu0 0.0
    %177 = vmatprep.subr.mxu0 0.0
    %178 = vmatpush1.msra.mxu0 0.0
    %179 = vmatprep.subr.mxu0 0.0
    %180 = vmatpush1.msra.mxu0 0.0
    %181 = vmatprep.subr.mxu0 0.0
    %182 = vmatpush1.msra.mxu0 0.0
    %183 = vmatprep.subr.mxu0 0.0
    %184 = vmatpush1.msra.mxu0 0.0
    %185 = vmatprep.subr.mxu0 0.0
    %186 = vmatpush1.msra.mxu0 0.0
    %187 = vmatprep.subr.mxu0 0.0
    %188 = vmatpush1.msra.mxu0 0.0
    %189 = vmatprep.subr.mxu0 0.0
    %190 = vmatpush1.msra.mxu0 0.0
    %191 = vmatprep.subr.mxu0 0.0
    %192 = vmatpush1.msra.mxu0 0.0
    %193 = vmatprep.subr.mxu0 0.0
    %194 = vmatpush1.msra.mxu0 0.0
    %195 = vmatprep.subr.mxu0 0.0
    %196 = vmatpush1.msra.mxu0 0.0
    %197 = vmatprep.subr.mxu0 0.0
    %198 = vmatpush1.msra.mxu0 0.0
    %199 = vmatprep.subr.mxu0 0.0
    %200 = vmatpush1.msra.mxu0 0.0
    %201 = vmatprep.subr.mxu0 0.0
    %202 = vmatpush1.msra.mxu0 0.0
    %203 = vmatprep.subr.mxu0 0.0
    %204 = vmatpush1.msra.mxu0 0.0
    %205 = vmatprep.subr.mxu0 0.0
    %206 = vmatpush1.msra.mxu0 0.0
    %207 = vmatprep.subr.mxu0 0.0
    %208 = vmatpush1.msra.mxu0 0.0
    %209 = vmatprep.subr.mxu0 0.0
    %210 = vmatpush1.msra.mxu0 0.0
    %211 = vmatprep.subr.mxu0 0.0
    %212 = vmatpush1.msra.mxu0 0.0
    %213 = vmatprep.subr.mxu0 0.0
    %214 = vmatpush1.msra.mxu0 0.0
    %215 = vmatprep.subr.mxu0 0.0
    %216 = vmatpush1.msra.mxu0 0.0
    %217 = vmatprep.subr.mxu0 0.0
    %218 = vmatpush1.msra.mxu0 0.0
    %219 = vmatprep.subr.mxu0 0.0
    %220 = vmatpush1.msra.mxu0 0.0
    %221 = vmatprep.subr.mxu0 0.0
    %222 = vmatpush1.msra.mxu0 0.0
    %223 = vmatprep.subr.mxu0 0.0
    %224 = vmatpush1.msra.mxu0 0.0
    %225 = vmatprep.mubr.f32.mxu0 0.0
    %226 = vmatmul.mubr.f32.gmra.mrb[0].mxu0 %v89
    %v227 = vpop.f32.mrb[0].mxu0
    %v228 = vadd.f32 %v158, %v227
    %v229 = vpop.f32.mrb[0].mxu0
    %230 = vdwg.mxu0
    %231 = vst [vmem:[#allocation7] sm:$0xff] %v228
    // Predicated region
    $region22: #{tpu_custom_call.1} parent=1 // pred_check
      _
    $region23: #{tpu_custom_call.1} parent=1 // pred_check_branch
      %233 = sbr.rel (0) target = $region25
    $region24: #{tpu_custom_call.1} parent=1 // pred_region
      %s235 = ssub.s32 128, 128
      %236 = vsyncadd [#allocation4], %s235
      %s238 = sshll.u32 [#allocation7], 4
      %s239 = int_to_ptr.vmem [resolvable:$true] %s238
      %241 = dma.vmem_to_hbm [thread:$0]  %s239, 128, %s3, [#allocation4]
    $region25: #{tpu_custom_call.1} parent=1 // pred_fallthru
      _
    // Predicated region
    $region26: #{tpu_custom_call.1} parent=1 // pred_check
      _
    $region27: #{tpu_custom_call.1} parent=1 // pred_check_branch
      %243 = sbr.rel (0) target = $region29
    $region28: #{tpu_custom_call.1} parent=1 // pred_region
      %244 = dma.done [#allocation4], 128
    $region29: #{tpu_custom_call.1} parent=1 // pred_fallthru
      _
    %245 = vsyncpa [#allocation3], 1
    %246 = vsyncpa [#allocation6], 1
    %247 = vsyncpa [#allocation4], 1

</llo_original>
